<compile_context>
chip_gen: v5e
topology: v5e:2x2
jax: 0.10.0
libtpu: 0.0.40
codegen_flags: <defaults>
</compile_context>

<pallas_src>
import jax
import jax.numpy as jnp
from jax.experimental import pallas as pl
from jax.experimental.pallas import tpu as pltpu

LANE = 128
SUBLANE = 8


def _round_up(x, m):
    return (x + m - 1) // m * m


def _mlp_kernel(x_ref, w1_ref, b1_ref, w2_ref, b2_ref, w4_ref, b4_ref, o_ref):
    # fc1 + ReLU  (bf16 operands, f32 accumulation; bias/ReLU in f32)
    h1 = jnp.dot(x_ref[...], w1_ref[...], preferred_element_type=jnp.float32)
    h1 = jnp.maximum(h1 + b1_ref[...], 0.0)
    # fc2 + ReLU
    h2 = jnp.dot(h1.astype(jnp.bfloat16), w2_ref[...],
                 preferred_element_type=jnp.float32)
    h2 = jnp.maximum(h2 + b2_ref[...], 0.0)
    # fc4 + sigmoid (fc3 is None for len(hidden_sizes) == 2).
    # Output dim is zero-padded to 128 -> lane-dense unmasked stores;
    # real logit lives in column 0, padded columns are sigmoid(0)=0.5 and
    # are sliced away in the wrapper.
    logits = jnp.dot(h2.astype(jnp.bfloat16), w4_ref[...],
                     preferred_element_type=jnp.float32)
    o_ref[...] = jax.nn.sigmoid(logits + b4_ref[...])


def _pad2d(a, rows, cols, dtype):
    a = a.astype(dtype)
    return jnp.pad(a, ((0, rows - a.shape[0]), (0, cols - a.shape[1])))


def prediction_model_forward(x, params, *, max_batch_tile=256):
    """x: [B, input_size] float32; params: dict of f32 weights/biases.

    Weights are stored [in_features, out_features]; biases [1, out_features].
    Returns [B, output_size] float32.
    """
    w1, b1 = params["w1"], params["b1"]
    w2, b2 = params["w2"], params["b2"]
    w4, b4 = params["w4"], params["b4"]

    B, F_in = x.shape
    H1, H2, OUT = w1.shape[1], w2.shape[1], w4.shape[1]

    # Lane-aligned (multiples of 128) padded dims: 335 -> 384, 1 -> 128.
    FP = _round_up(F_in, LANE)
    H1P = _round_up(H1, LANE)
    H2P = _round_up(H2, LANE)
    OUTP = _round_up(OUT, LANE)

    # Batch tile: multiple of 8 sublanes, capped at max_batch_tile.
    TB = min(max_batch_tile, _round_up(B, SUBLANE))
    B_pad = _round_up(B, TB)

    # Zero-pad everything (padded rows/cols contribute exactly 0 to the dots)
    # and cast matmul operands to bf16; biases stay f32.
    x_p = _pad2d(x, B_pad, FP, jnp.bfloat16)
    w1_p = _pad2d(w1, FP, H1P, jnp.bfloat16)
    w2_p = _pad2d(w2, H1P, H2P, jnp.bfloat16)
    w4_p = _pad2d(w4, H2P, OUTP, jnp.bfloat16)
    b1_p = _pad2d(b1, 1, H1P, jnp.float32)
    b2_p = _pad2d(b2, 1, H2P, jnp.float32)
    b4_p = _pad2d(b4, 1, OUTP, jnp.float32)

    grid = (pl.cdiv(B_pad, TB),)

    def const_spec(shape):
        # Same block every grid step -> DMA'd once, VMEM-resident weights.
        return pl.BlockSpec(shape, lambda i: (0, 0))

    flops = 2 * B_pad * (FP * H1P + H1P * H2P + H2P * OUTP)
    bytes_accessed = (
        x_p.size * 2
        + (w1_p.size + w2_p.size + w4_p.size) * 2
        + (b1_p.size + b2_p.size + b4_p.size) * 4
        + B_pad * OUTP * 4
    )
    cost = pl.CostEstimate(
        flops=flops,
        transcendentals=B_pad * OUTP,  # sigmoid
        bytes_accessed=bytes_accessed,
    )

    out = pl.pallas_call(
        _mlp_kernel,
        out_shape=jax.ShapeDtypeStruct((B_pad, OUTP), jnp.float32),
        grid=grid,
        in_specs=[
            pl.BlockSpec((TB, FP), lambda i: (i, 0)),
            const_spec(w1_p.shape), const_spec(b1_p.shape),
            const_spec(w2_p.shape), const_spec(b2_p.shape),
            const_spec(w4_p.shape), const_spec(b4_p.shape),
        ],
        out_specs=pl.BlockSpec((TB, OUTP), lambda i: (i, 0)),
        compiler_params=pltpu.CompilerParams(
            dimension_semantics=("parallel",),
        ),
        cost_estimate=cost,
    )(x_p, w1_p, b1_p, w2_p, b2_p, w4_p, b4_p)

    # Strip batch padding and the padded head columns.
    return out[:B, :OUT]


def init_params(key, input_size, hidden_sizes, output_size):
    """Deterministic, PyTorch-Linear-like uniform init (synthetic weights).

    Weights stored [in_features, out_features] (i.e. transpose of PyTorch's
    layout) so the forward is x @ W + b.
    """
    ks = jax.random.split(key, 6)

    def linear(kw, kb, fan_in, fan_out):
        bound = 1.0 / (fan_in ** 0.5)
        w = jax.random.uniform(kw, (fan_in, fan_out), jnp.float32, -bound, bound)
        b = jax.random.uniform(kb, (1, fan_out), jnp.float32, -bound, bound)
        return w, b

    w1, b1 = linear(ks[0], ks[1], input_size, hidden_sizes[0])
    w2, b2 = linear(ks[2], ks[3], hidden_sizes[0], hidden_sizes[1])
    w4, b4 = linear(ks[4], ks[5], hidden_sizes[1], output_size)
    return {"w1": w1, "b1": b1, "w2": w2, "b2": b2, "w4": w4, "b4": b4}


if __name__ == "__main__":
    input_size = 2 * 167 + 1          # 335
    hidden_sizes = [2 * 167 + 1, 2 * 167 + 1]
    output_size = 1
    batch = 8

    key = jax.random.PRNGKey(0)
    k_x, k_p = jax.random.split(key)
    x = jax.random.normal(k_x, (batch, input_size), jnp.float32)
    params = init_params(k_p, input_size, hidden_sizes, output_size)

    out = prediction_model_forward(x, params)
    out = jax.block_until_ready(out)
    assert out.shape == (batch, output_size)

    # Pure-JAX reference with the same bf16-operand / f32-accumulate math.
    w1b = params["w1"].astype(jnp.bfloat16)
    w2b = params["w2"].astype(jnp.bfloat16)
    w4b = params["w4"].astype(jnp.bfloat16)
    xb = x.astype(jnp.bfloat16)
    h1 = jnp.maximum(
        jnp.dot(xb, w1b, preferred_element_type=jnp.float32) + params["b1"], 0.0)
    h2 = jnp.maximum(
        jnp.dot(h1.astype(jnp.bfloat16), w2b,
                preferred_element_type=jnp.float32) + params["b2"], 0.0)
    ref = jax.nn.sigmoid(
        jnp.dot(h2.astype(jnp.bfloat16), w4b,
                preferred_element_type=jnp.float32) + params["b4"])
    assert jnp.allclose(out, ref, atol=2e-3), "mismatch vs reference"

    # Looser check vs the full-f32 reference (bf16 weight rounding only).
    h1f = jnp.maximum(x @ params["w1"] + params["b1"], 0.0)
    h2f = jnp.maximum(h1f @ params["w2"] + params["b2"], 0.0)
    reff = jax.nn.sigmoid(h2f @ params["w4"] + params["b4"])
    assert jnp.allclose(out, reff, atol=5e-2), "mismatch vs f32 reference"

    print("KERNEL_OK")
</pallas_src>

<mosaic_0001>
module attributes {stable_mosaic.version = 11 : i64} {
  func.func @_mlp_kernel(%arg0: i32, %arg1: memref<8x384xbf16, #tpu.memory_space<vmem>>, %arg2: memref<384x384xbf16, #tpu.memory_space<vmem>>, %arg3: memref<1x384xf32, #tpu.memory_space<vmem>>, %arg4: memref<384x384xbf16, #tpu.memory_space<vmem>>, %arg5: memref<1x384xf32, #tpu.memory_space<vmem>>, %arg6: memref<384x128xbf16, #tpu.memory_space<vmem>>, %arg7: memref<1x128xf32, #tpu.memory_space<vmem>>, %arg8: memref<8x128xf32, #tpu.memory_space<vmem>>) attributes {dimension_semantics = [#tpu.dimension_semantics<parallel>], iteration_bounds = array<i64: 1>, scalar_prefetch = 0 : i64, scratch_operands = 0 : i64, tpu.core_type = #tpu.core_type<tc>, window_params = [{transform_indices = @transform_0, window_bounds = array<i64: 8, 384>}, {pipeline_mode = #tpu.pipeline_mode<synchronous>, transform_indices = @transform_1, window_bounds = array<i64: 384, 384>}, {pipeline_mode = #tpu.pipeline_mode<synchronous>, transform_indices = @transform_2, window_bounds = array<i64: 1, 384>}, {pipeline_mode = #tpu.pipeline_mode<synchronous>, transform_indices = @transform_3, window_bounds = array<i64: 384, 384>}, {pipeline_mode = #tpu.pipeline_mode<synchronous>, transform_indices = @transform_4, window_bounds = array<i64: 1, 384>}, {pipeline_mode = #tpu.pipeline_mode<synchronous>, transform_indices = @transform_5, window_bounds = array<i64: 384, 128>}, {pipeline_mode = #tpu.pipeline_mode<synchronous>, transform_indices = @transform_6, window_bounds = array<i64: 1, 128>}, {transform_indices = @transform_7, window_bounds = array<i64: 8, 128>}]} {
    %c0 = arith.constant 0 : index
    %c0_0 = arith.constant 0 : index
    %0 = vector.load %arg1[%c0, %c0_0] : memref<8x384xbf16, #tpu.memory_space<vmem>>, vector<8x384xbf16>
    %c0_1 = arith.constant 0 : index
    %c0_2 = arith.constant 0 : index
    %1 = vector.load %arg2[%c0_1, %c0_2] : memref<384x384xbf16, #tpu.memory_space<vmem>>, vector<384x384xbf16>
    %cst = arith.constant dense<0.000000e+00> : vector<8x384xf32>
    %2 = tpu.matmul %0, %1, %cst {dimension_numbers = #tpu.dot_dimension_numbers<[1], [0], [0], [1], [0, 0, 1, 1], [], []>} : vector<8x384xbf16>, vector<384x384xbf16>, vector<8x384xf32> -> vector<8x384xf32>
    %c0_3 = arith.constant 0 : index
    %c0_4 = arith.constant 0 : index
    %3 = vector.load %arg3[%c0_3, %c0_4] : memref<1x384xf32, #tpu.memory_space<vmem>>, vector<1x384xf32>
    %4 = vector.broadcast %3 : vector<1x384xf32> to vector<8x384xf32>
    %5 = arith.addf %2, %4 : vector<8x384xf32>
    %cst_5 = arith.constant 0.000000e+00 : f32
    %6 = vector.broadcast %cst_5 : f32 to vector<8x384xf32>
    %7 = arith.maximumf %5, %6 : vector<8x384xf32>
    %8 = arith.truncf %7 : vector<8x384xf32> to vector<8x384xbf16>
    %c0_6 = arith.constant 0 : index
    %c0_7 = arith.constant 0 : index
    %9 = vector.load %arg4[%c0_6, %c0_7] : memref<384x384xbf16, #tpu.memory_space<vmem>>, vector<384x384xbf16>
    %cst_8 = arith.constant dense<0.000000e+00> : vector<8x384xf32>
    %10 = tpu.matmul %8, %9, %cst_8 {dimension_numbers = #tpu.dot_dimension_numbers<[1], [0], [0], [1], [0, 0, 1, 1], [], []>} : vector<8x384xbf16>, vector<384x384xbf16>, vector<8x384xf32> -> vector<8x384xf32>
    %c0_9 = arith.constant 0 : index
    %c0_10 = arith.constant 0 : index
    %11 = vector.load %arg5[%c0_9, %c0_10] : memref<1x384xf32, #tpu.memory_space<vmem>>, vector<1x384xf32>
    %12 = vector.broadcast %11 : vector<1x384xf32> to vector<8x384xf32>
    %13 = arith.addf %10, %12 : vector<8x384xf32>
    %cst_11 = arith.constant 0.000000e+00 : f32
    %14 = vector.broadcast %cst_11 : f32 to vector<8x384xf32>
    %15 = arith.maximumf %13, %14 : vector<8x384xf32>
    %16 = arith.truncf %15 : vector<8x384xf32> to vector<8x384xbf16>
    %c0_12 = arith.constant 0 : index
    %c0_13 = arith.constant 0 : index
    %17 = vector.load %arg6[%c0_12, %c0_13] : memref<384x128xbf16, #tpu.memory_space<vmem>>, vector<384x128xbf16>
    %cst_14 = arith.constant dense<0.000000e+00> : vector<8x128xf32>
    %18 = tpu.matmul %16, %17, %cst_14 {dimension_numbers = #tpu.dot_dimension_numbers<[1], [0], [0], [1], [0, 0, 1, 1], [], []>} : vector<8x384xbf16>, vector<384x128xbf16>, vector<8x128xf32> -> vector<8x128xf32>
    %c0_15 = arith.constant 0 : index
    %c0_16 = arith.constant 0 : index
    %19 = vector.load %arg7[%c0_15, %c0_16] : memref<1x128xf32, #tpu.memory_space<vmem>>, vector<1x128xf32>
    %20 = vector.broadcast %19 : vector<1x128xf32> to vector<8x128xf32>
    %21 = arith.addf %18, %20 : vector<8x128xf32>
    %22 = arith.negf %21 : vector<8x128xf32>
    %23 = math.exp %22 : vector<8x128xf32>
    %cst_17 = arith.constant 1.000000e+00 : f32
    %24 = vector.broadcast %cst_17 : f32 to vector<8x128xf32>
    %25 = arith.addf %24, %23 : vector<8x128xf32>
    %26 = arith.divf %24, %25 : vector<8x128xf32>
    %c0_18 = arith.constant 0 : index
    %c0_19 = arith.constant 0 : index
    %27 = vector.load %arg8[%c0_18, %c0_19] : memref<8x128xf32, #tpu.memory_space<vmem>>, vector<8x128xf32>
    tpu.vector_store %arg8[%c0_18, %c0_19], %26 {strides = array<i32>} : memref<8x128xf32, #tpu.memory_space<vmem>>, vector<8x128xf32>,
    return
  }
  func.func @transform_0(%arg0: i32) -> (i32, i32) {
    %c0_i32 = arith.constant 0 : i32
    %c0_i32_0 = arith.constant 0 : i32
    return %arg0, %c0_i32 : i32, i32
  }
  func.func @transform_1(%arg0: i32) -> (i32, i32) {
    %c0_i32 = arith.constant 0 : i32
    %c0_i32_0 = arith.constant 0 : i32
    %c0_i32_1 = arith.constant 0 : i32
    return %c0_i32, %c0_i32_0 : i32, i32
  }
  func.func @transform_2(%arg0: i32) -> (i32, i32) {
    %c0_i32 = arith.constant 0 : i32
    %c0_i32_0 = arith.constant 0 : i32
    %c0_i32_1 = arith.constant 0 : i32
    return %c0_i32, %c0_i32_0 : i32, i32
  }
  func.func @transform_3(%arg0: i32) -> (i32, i32) {
    %c0_i32 = arith.constant 0 : i32
    %c0_i32_0 = arith.constant 0 : i32
    %c0_i32_1 = arith.constant 0 : i32
    return %c0_i32, %c0_i32_0 : i32, i32
  }
  func.func @transform_4(%arg0: i32) -> (i32, i32) {
    %c0_i32 = arith.constant 0 : i32
    %c0_i32_0 = arith.constant 0 : i32
    %c0_i32_1 = arith.constant 0 : i32
    return %c0_i32, %c0_i32_0 : i32, i32
  }
  func.func @transform_5(%arg0: i32) -> (i32, i32) {
    %c0_i32 = arith.constant 0 : i32
    %c0_i32_0 = arith.constant 0 : i32
    %c0_i32_1 = arith.constant 0 : i32
    return %c0_i32, %c0_i32_0 : i32, i32
  }
  func.func @transform_6(%arg0: i32) -> (i32, i32) {
    %c0_i32 = arith.constant 0 : i32
    %c0_i32_0 = arith.constant 0 : i32
    %c0_i32_1 = arith.constant 0 : i32
    return %c0_i32, %c0_i32_0 : i32, i32
  }
  func.func @transform_7(%arg0: i32) -> (i32, i32) {
    %c0_i32 = arith.constant 0 : i32
    %c0_i32_0 = arith.constant 0 : i32
    return %arg0, %c0_i32 : i32, i32
  }
}

</mosaic_0001>

<llo_original>
// kernel: tpu_custom_call.1
$region0: #{tpu_custom_call.1}
  #allocation0 [shape = 'u32[]', space=smem, size = 0x4, offset = 0x4, fixed_abs, tag = 'smem constant byte address 0x4 - core index']
  #allocation1 [shape = 'u32[72,128]{1,0:T(1,128)}', space=vmem, size = 0x9000, scoped, tag = 'internal scratch']
  %s0 = inlined_call_operand.hbm [shape: bf16[8,384], index: 0, kind: input, shape index: {}]
  %s1 = inlined_call_operand.hbm [shape: bf16[384,384], index: 1, kind: input, shape index: {}]
  %s2 = inlined_call_operand.hbm [shape: f32[1,384], index: 2, kind: input, shape index: {}]
  %s3 = inlined_call_operand.hbm [shape: bf16[384,384], index: 3, kind: input, shape index: {}]
  %s4 = inlined_call_operand.vmem [shape: f32[1,384], index: 4, kind: input, shape index: {}]
  %s5 = inlined_call_operand.hbm [shape: bf16[384,128], index: 5, kind: input, shape index: {}]
  %s6 = inlined_call_operand.vmem [shape: f32[1,128], index: 6, kind: input, shape index: {}]
  %s7 = inlined_call_operand.hbm [shape: f32[8,128], index: 7, kind: output, shape index: {}]
  %s8 = sld [smem:[#allocation0]]
  $region58: #{tpu_custom_call.1} parent=0
    _
  %s10 = ssub.s32 1, %s8
  %s11 = scalar_select 0, %s10, %s8
  $region1: #{tpu_custom_call.1} parent=0
    #allocation2 [shape = 'u8[6144]{0}', space=vmem, size = 0x1800, scoped, tag = 'input window, operand 0, single buffered']
    #allocation3 [shape = 's32[1]{0}', space=sflag, size = 0x4, scoped, tag = 'scoped memory for tpu_custom_call.1']
    #allocation4 [shape = 's32[1]{0}', space=sflag, size = 0x4, scoped, tag = 'scoped memory for tpu_custom_call.1']
    #allocation5 [shape = 'u8[294912]{0}', space=vmem, size = 0x48000, scoped, tag = 'input window, operand 1, single buffered']
    #allocation6 [shape = 's32[1]{0}', space=sflag, size = 0x4, scoped, tag = 'scoped memory for tpu_custom_call.1']
    #allocation7 [shape = 'u8[1536]{0}', space=vmem, size = 0x800, scoped, tag = 'input window, operand 2, single buffered']
    #allocation8 [shape = 'u8[294912]{0}', space=vmem, size = 0x48000, scoped, tag = 'input window, operand 3, single buffered']
    #allocation9 [shape = 's32[1]{0}', space=sflag, size = 0x4, scoped, tag = 'scoped memory for tpu_custom_call.1']
    #allocation10 [shape = 'u8[98304]{0}', space=vmem, size = 0x18000, scoped, tag = 'input window, operand 5, single buffered']
    #allocation11 [shape = 'u8[4096]{0}', space=vmem, size = 0x1000, scoped, tag = 'output window, operand 0, single buffered']
    %12 = vsyncpa [#allocation3], 0
    %13 = vsyncpa [#allocation6], 0
    %14 = vsyncpa [#allocation9], 0
    %15 = vsyncpa [#allocation4], 0
    // Predicated region
    $region2: #{tpu_custom_call.1} parent=1 // pred_check
      _
    $region3: #{tpu_custom_call.1} parent=1 // pred_check_branch
      %17 = sbr.rel (0) target = $region5
    $region4: #{tpu_custom_call.1} parent=1 // pred_region
      %19 = vsyncadd [#allocation3], 0
      %s21 = sshll.u32 %s0, 4
      %s22 = int_to_ptr.hbm [resolvable:$true] %s21
      %s23 = sshll.u32 [#allocation2], 4
      %s24 = int_to_ptr.vmem [resolvable:$true] %s23
      %26 = dma.hbm_to_vmem [thread:$0]  %s22, 192, %s24, [#allocation3]
    $region5: #{tpu_custom_call.1} parent=1 // pred_fallthru
      _
    // Predicated region
    $region6: #{tpu_custom_call.1} parent=1 // pred_check
      _
    $region7: #{tpu_custom_call.1} parent=1 // pred_check_branch
      %28 = sbr.rel (0) target = $region9
    $region8: #{tpu_custom_call.1} parent=1 // pred_region
      %30 = vsyncadd [#allocation6], 0
      %s31 = sshll.u32 %s1, 4
      %s32 = int_to_ptr.hbm [resolvable:$true] %s31
      %s33 = sshll.u32 [#allocation5], 4
      %s34 = int_to_ptr.vmem [resolvable:$true] %s33
      %39 = dma.hbm_to_vmem [thread:$0]  %s32, 9216, %s34, [#allocation6], 192, 192, 12
    $region9: #{tpu_custom_call.1} parent=1 // pred_fallthru
      _
    // Predicated region
    $region10: #{tpu_custom_call.1} parent=1 // pred_check
      _
    $region11: #{tpu_custom_call.1} parent=1 // pred_check_branch
      %41 = sbr.rel (0) target = $region13
    $region12: #{tpu_custom_call.1} parent=1 // pred_region
      %43 = vsyncadd [#allocation6], 0
      %s45 = sshll.u32 %s2, 4
      %s46 = int_to_ptr.hbm [resolvable:$true] %s45
      %s47 = sshll.u32 [#allocation7], 4
      %s48 = int_to_ptr.vmem [resolvable:$true] %s47
      %50 = dma.hbm_to_vmem [thread:$0]  %s46, 48, %s48, [#allocation6]
    $region13: #{tpu_custom_call.1} parent=1 // pred_fallthru
      _
    // Predicated region
    $region14: #{tpu_custom_call.1} parent=1 // pred_check
      _
    $region15: #{tpu_custom_call.1} parent=1 // pred_check_branch
      %52 = sbr.rel (0) target = $region17
    $region16: #{tpu_custom_call.1} parent=1 // pred_region
      %54 = vsyncadd [#allocation9], 0
      %s55 = sshll.u32 %s3, 4
      %s56 = int_to_ptr.hbm [resolvable:$true] %s55
      %s57 = sshll.u32 [#allocation8], 4
      %s58 = int_to_ptr.vmem [resolvable:$true] %s57
      %63 = dma.hbm_to_vmem [thread:$0]  %s56, 9216, %s58, [#allocation9], 192, 192, 12
    $region17: #{tpu_custom_call.1} parent=1 // pred_fallthru
      _
    // Predicated region
    $region18: #{tpu_custom_call.1} parent=1 // pred_check
      _
    $region19: #{tpu_custom_call.1} parent=1 // pred_check_branch
      %65 = sbr.rel (0) target = $region21
    $region20: #{tpu_custom_call.1} parent=1 // pred_region
      _
    $region21: #{tpu_custom_call.1} parent=1 // pred_fallthru
      _
    // Predicated region
    $region22: #{tpu_custom_call.1} parent=1 // pred_check
      _
    $region23: #{tpu_custom_call.1} parent=1 // pred_check_branch
      %67 = sbr.rel (0) target = $region25
    $region24: #{tpu_custom_call.1} parent=1 // pred_region
      %69 = vsyncadd [#allocation9], 0
      %s70 = sshll.u32 %s5, 4
      %s71 = int_to_ptr.hbm [resolvable:$true] %s70
      %s72 = sshll.u32 [#allocation10], 4
      %s73 = int_to_ptr.vmem [resolvable:$true] %s72
      %78 = dma.hbm_to_vmem [thread:$0]  %s71, 3072, %s73, [#allocation9], 64, 64, 4
    $region25: #{tpu_custom_call.1} parent=1 // pred_fallthru
      _
    // Predicated region
    $region26: #{tpu_custom_call.1} parent=1 // pred_check
      _
    $region27: #{tpu_custom_call.1} parent=1 // pred_check_branch
      %80 = sbr.rel (0) target = $region29
    $region28: #{tpu_custom_call.1} parent=1 // pred_region
      _
    $region29: #{tpu_custom_call.1} parent=1 // pred_fallthru
      _
    // Predicated region
    $region30: #{tpu_custom_call.1} parent=1 // pred_check
      _
    $region31: #{tpu_custom_call.1} parent=1 // pred_check_branch
      %82 = sbr.rel (0) target = $region33
    $region32: #{tpu_custom_call.1} parent=1 // pred_region
      %84 = dma.done [#allocation3], 192
    $region33: #{tpu_custom_call.1} parent=1 // pred_fallthru
      _
    // Predicated region
    $region34: #{tpu_custom_call.1} parent=1 // pred_check
      _
    $region35: #{tpu_custom_call.1} parent=1 // pred_check_branch
      %86 = sbr.rel (0) target = $region37
    $region36: #{tpu_custom_call.1} parent=1 // pred_region
      %88 = dma.done [#allocation6], 9216
    $region37: #{tpu_custom_call.1} parent=1 // pred_fallthru
      _
    // Predicated region
    $region38: #{tpu_custom_call.1} parent=1 // pred_check
      _
    $region39: #{tpu_custom_call.1} parent=1 // pred_check_branch
      %90 = sbr.rel (0) target = $region41
    $region40: #{tpu_custom_call.1} parent=1 // pred_region
      %92 = dma.done [#allocation6], 48
    $region41: #{tpu_custom_call.1} parent=1 // pred_fallthru
      _
    // Predicated region
    $region42: #{tpu_custom_call.1} parent=1 // pred_check
      _
    $region43: #{tpu_custom_call.1} parent=1 // pred_check_branch
      %94 = sbr.rel (0) target = $region45
    $region44: #{tpu_custom_call.1} parent=1 // pred_region
      %96 = dma.done [#allocation9], 9216
    $region45: #{tpu_custom_call.1} parent=1 // pred_fallthru
      _
    // Predicated region
    $region46: #{tpu_custom_call.1} parent=1 // pred_check
      _
    $region47: #{tpu_custom_call.1} parent=1 // pred_check_branch
      %98 = sbr.rel (0) target = $region49
    $region48: #{tpu_custom_call.1} parent=1 // pred_region
      %100 = dma.done [#allocation9], 3072
    $region49: #{tpu_custom_call.1} parent=1 // pred_fallthru
      _
    %v101 = vld [vmem:[#allocation2] sm:$0xff]
    %v102 = vld [vmem:[#allocation2 + $0x8] sm:$0xf]
    %v103 = vld [vmem:[#allocation5] sm:$0xff]
    %v104 = vld [vmem:[#allocation5 + $0x8] sm:$0xf]
    %v105 = vld [vmem:[#allocation5 + $0xc] sm:$0xff]
    %v106 = vld [vmem:[#allocation5 + $0x14] sm:$0xf]
    %v107 = vld [vmem:[#allocation5 + $0x18] sm:$0xff]
    %v108 = vld [vmem:[#allocation5 + $0x20] sm:$0xf]
    %v109 = vld [vmem:[#allocation5 + $0x24] sm:$0xff]
    %v110 = vld [vmem:[#allocation5 + $0x2c] sm:$0xf]
    %v111 = vld [vmem:[#allocation5 + $0x30] sm:$0xff]
    %v112 = vld [vmem:[#allocation5 + $0x38] sm:$0xf]
    %v113 = vld [vmem:[#allocation5 + $0x3c] sm:$0xff]
    %v114 = vld [vmem:[#allocation5 + $0x44] sm:$0xf]
    %v115 = vld [vmem:[#allocation5 + $0x48] sm:$0xff]
    %v116 = vld [vmem:[#allocation5 + $0x50] sm:$0xf]
    %v117 = vld [vmem:[#allocation5 + $0x54] sm:$0xff]
    %v118 = vld [vmem:[#allocation5 + $0x5c] sm:$0xf]
    %v119 = vld [vmem:[#allocation5 + $0x60] sm:$0xff]
    %v120 = vld [vmem:[#allocation5 + $0x68] sm:$0xf]
    %v121 = vld [vmem:[#allocation5 + $0x6c] sm:$0xff]
    %v122 = vld [vmem:[#allocation5 + $0x74] sm:$0xf]
    %v123 = vld [vmem:[#allocation5 + $0x78] sm:$0xff]
    %v124 = vld [vmem:[#allocation5 + $0x80] sm:$0xf]
    %v125 = vld [vmem:[#allocation5 + $0x84] sm:$0xff]
    %v126 = vld [vmem:[#allocation5 + $0x8c] sm:$0xf]
    %v127 = vld [vmem:[#allocation5 + $0x90] sm:$0xff]
    %v128 = vld [vmem:[#allocation5 + $0x98] sm:$0xf]
    %v129 = vld [vmem:[#allocation5 + $0x9c] sm:$0xff]
    %v130 = vld [vmem:[#allocation5 + $0xa4] sm:$0xf]
    %v131 = vld [vmem:[#allocation5 + $0xa8] sm:$0xff]
    %v132 = vld [vmem:[#allocation5 + $0xb0] sm:$0xf]
    %v133 = vld [vmem:[#allocation5 + $0xb4] sm:$0xff]
    %v134 = vld [vmem:[#allocation5 + $0xbc] sm:$0xf]
    %v135 = vld [vmem:[#allocation5 + $0xc0] sm:$0xff]
    %v136 = vld [vmem:[#allocation5 + $0xc8] sm:$0xf]
    %v137 = vld [vmem:[#allocation5 + $0xcc] sm:$0xff]
    %v138 = vld [vmem:[#allocation5 + $0xd4] sm:$0xf]
    %v139 = vld [vmem:[#allocation5 + $0xd8] sm:$0xff]
    %v140 = vld [vmem:[#allocation5 + $0xe0] sm:$0xf]
    %v141 = vld [vmem:[#allocation5 + $0xe4] sm:$0xff]
    %v142 = vld [vmem:[#allocation5 + $0xec] sm:$0xf]
    %v143 = vld [vmem:[#allocation5 + $0xf0] sm:$0xff]
    %v144 = vld [vmem:[#allocation5 + $0xf8] sm:$0xf]
    %v145 = vld [vmem:[#allocation5 + $0xfc] sm:$0xff]
    %v146 = vld [vmem:[#allocation5 + $0x104] sm:$0xf]
    %v147 = vld [vmem:[#allocation5 + $0x108] sm:$0xff]
    %v148 = vld [vmem:[#allocation5 + $0x110] sm:$0xf]
    %v149 = vld [vmem:[#allocation5 + $0x114] sm:$0xff]
    %v150 = vld [vmem:[#allocation5 + $0x11c] sm:$0xf]
    %v151 = vld [vmem:[#allocation5 + $0x120] sm:$0xff]
    %v152 = vld [vmem:[#allocation5 + $0x128] sm:$0xf]
    %v153 = vld [vmem:[#allocation5 + $0x12c] sm:$0xff]
    %v154 = vld [vmem:[#allocation5 + $0x134] sm:$0xf]
    %v155 = vld [vmem:[#allocation5 + $0x138] sm:$0xff]
    %v156 = vld [vmem:[#allocation5 + $0x140] sm:$0xf]
    %v157 = vld [vmem:[#allocation5 + $0x144] sm:$0xff]
    %v158 = vld [vmem:[#allocation5 + $0x14c] sm:$0xf]
    %v159 = vld [vmem:[#allocation5 + $0x150] sm:$0xff]
    %v160 = vld [vmem:[#allocation5 + $0x158] sm:$0xf]
    %v161 = vld [vmem:[#allocation5 + $0x15c] sm:$0xff]
    %v162 = vld [vmem:[#allocation5 + $0x164] sm:$0xf]
    %v163 = vld [vmem:[#allocation5 + $0x168] sm:$0xff]
    %v164 = vld [vmem:[#allocation5 + $0x170] sm:$0xf]
    %v165 = vld [vmem:[#allocation5 + $0x174] sm:$0xff]
    %v166 = vld [vmem:[#allocation5 + $0x17c] sm:$0xf]
    %v167 = vld [vmem:[#allocation5 + $0x180] sm:$0xff]
    %v168 = vld [vmem:[#allocation5 + $0x188] sm:$0xf]
    %v169 = vld [vmem:[#allocation5 + $0x18c] sm:$0xff]
    %v170 = vld [vmem:[#allocation5 + $0x194] sm:$0xf]
    %v171 = vld [vmem:[#allocation5 + $0x198] sm:$0xff]
    %v172 = vld [vmem:[#allocation5 + $0x1a0] sm:$0xf]
    %v173 = vld [vmem:[#allocation5 + $0x1a4] sm:$0xff]
    %v174 = vld [vmem:[#allocation5 + $0x1ac] sm:$0xf]
    %v175 = vld [vmem:[#allocation5 + $0x1b0] sm:$0xff]
    %v176 = vld [vmem:[#allocation5 + $0x1b8] sm:$0xf]
    %v177 = vld [vmem:[#allocation5 + $0x1bc] sm:$0xff]
    %v178 = vld [vmem:[#allocation5 + $0x1c4] sm:$0xf]
    %v179 = vld [vmem:[#allocation5 + $0x1c8] sm:$0xff]
    %v180 = vld [vmem:[#allocation5 + $0x1d0] sm:$0xf]
    %v181 = vld [vmem:[#allocation5 + $0x1d4] sm:$0xff]
    %v182 = vld [vmem:[#allocation5 + $0x1dc] sm:$0xf]
    %v183 = vld [vmem:[#allocation5 + $0x1e0] sm:$0xff]
    %v184 = vld [vmem:[#allocation5 + $0x1e8] sm:$0xf]
    %v185 = vld [vmem:[#allocation5 + $0x1ec] sm:$0xff]
    %v186 = vld [vmem:[#allocation5 + $0x1f4] sm:$0xf]
    %v187 = vld [vmem:[#allocation5 + $0x1f8] sm:$0xff]
    %v188 = vld [vmem:[#allocation5 + $0x200] sm:$0xf]
    %v189 = vld [vmem:[#allocation5 + $0x204] sm:$0xff]
    %v190 = vld [vmem:[#allocation5 + $0x20c] sm:$0xf]
    %v191 = vld [vmem:[#allocation5 + $0x210] sm:$0xff]
    %v192 = vld [vmem:[#allocation5 + $0x218] sm:$0xf]
    %v193 = vld [vmem:[#allocation5 + $0x21c] sm:$0xff]
    %v194 = vld [vmem:[#allocation5 + $0x224] sm:$0xf]
    %v195 = vld [vmem:[#allocation5 + $0x228] sm:$0xff]
    %v196 = vld [vmem:[#allocation5 + $0x230] sm:$0xf]
    %v197 = vld [vmem:[#allocation5 + $0x234] sm:$0xff]
    %v198 = vld [vmem:[#allocation5 + $0x23c] sm:$0xf]
    %v199 = vld [vmem:[#allocation7] sm:$0x7]
    %v201 = vperm.slane %v199, 0
    %v202 = vperm.slane %v199, 1
    %v203 = vperm.slane %v199, 2
    %v209 = vunpack.c.l.b16 %v101
    %v210 = vunpack.c.h.b16 %v101
    %v211 = vunpack.c.l.b16 %v102
    %v212 = vpack.c.b16 %v209, %v209
    %v213 = vpack.c.b16 %v210, %v210
    %v214 = vpack.c.b16 %v211, %v211
    %v314 = vunpack.c.l.b16 %v103
    %v315 = vunpack.c.h.b16 %v103
    %v316 = vunpack.c.l.b16 %v104
    %v317 = vunpack.c.l.b16 %v105
    %v318 = vunpack.c.h.b16 %v105
    %v319 = vunpack.c.l.b16 %v106
    %v320 = vunpack.c.l.b16 %v107
    %v321 = vunpack.c.h.b16 %v107
    %v322 = vunpack.c.l.b16 %v108
    %v323 = vunpack.c.l.b16 %v109
    %v324 = vunpack.c.h.b16 %v109
    %v325 = vunpack.c.l.b16 %v110
    %v326 = vunpack.c.l.b16 %v111
    %v327 = vunpack.c.h.b16 %v111
    %v328 = vunpack.c.l.b16 %v112
    %v329 = vunpack.c.l.b16 %v113
    %v330 = vunpack.c.h.b16 %v113
    %v331 = vunpack.c.l.b16 %v114
    %v332 = vunpack.c.l.b16 %v115
    %v333 = vunpack.c.h.b16 %v115
    %v334 = vunpack.c.l.b16 %v116
    %v335 = vunpack.c.l.b16 %v117
    %v336 = vunpack.c.h.b16 %v117
    %v337 = vunpack.c.l.b16 %v118
    %v338 = vunpack.c.l.b16 %v119
    %v339 = vunpack.c.h.b16 %v119
    %v340 = vunpack.c.l.b16 %v120
    %v341 = vunpack.c.l.b16 %v121
    %v342 = vunpack.c.h.b16 %v121
    %v343 = vunpack.c.l.b16 %v122
    %v344 = vunpack.c.l.b16 %v123
    %v345 = vunpack.c.h.b16 %v123
    %v346 = vunpack.c.l.b16 %v124
    %v347 = vunpack.c.l.b16 %v125
    %v348 = vunpack.c.h.b16 %v125
    %v349 = vunpack.c.l.b16 %v126
    %v350 = vunpack.c.l.b16 %v127
    %v351 = vunpack.c.h.b16 %v127
    %v352 = vunpack.c.l.b16 %v128
    %v353 = vunpack.c.l.b16 %v129
    %v354 = vunpack.c.h.b16 %v129
    %v355 = vunpack.c.l.b16 %v130
    %v356 = vunpack.c.l.b16 %v131
    %v357 = vunpack.c.h.b16 %v131
    %v358 = vunpack.c.l.b16 %v132
    %v359 = vunpack.c.l.b16 %v133
    %v360 = vunpack.c.h.b16 %v133
    %v361 = vunpack.c.l.b16 %v134
    %v362 = vunpack.c.l.b16 %v135
    %v363 = vunpack.c.h.b16 %v135
    %v364 = vunpack.c.l.b16 %v136
    %v365 = vunpack.c.l.b16 %v137
    %v366 = vunpack.c.h.b16 %v137
    %v367 = vunpack.c.l.b16 %v138
    %v368 = vunpack.c.l.b16 %v139
    %v369 = vunpack.c.h.b16 %v139
    %v370 = vunpack.c.l.b16 %v140
    %v371 = vunpack.c.l.b16 %v141
    %v372 = vunpack.c.h.b16 %v141
    %v373 = vunpack.c.l.b16 %v142
    %v374 = vunpack.c.l.b16 %v143
    %v375 = vunpack.c.h.b16 %v143
    %v376 = vunpack.c.l.b16 %v144
    %v377 = vunpack.c.l.b16 %v145
    %v378 = vunpack.c.h.b16 %v145
    %v379 = vunpack.c.l.b16 %v146
    %v380 = vunpack.c.l.b16 %v147
    %v381 = vunpack.c.h.b16 %v147
    %v382 = vunpack.c.l.b16 %v148
    %v383 = vunpack.c.l.b16 %v149
    %v384 = vunpack.c.h.b16 %v149
    %v385 = vunpack.c.l.b16 %v150
    %v386 = vunpack.c.l.b16 %v151
    %v387 = vunpack.c.h.b16 %v151
    %v388 = vunpack.c.l.b16 %v152
    %v389 = vunpack.c.l.b16 %v153
    %v390 = vunpack.c.h.b16 %v153
    %v391 = vunpack.c.l.b16 %v154
    %v392 = vunpack.c.l.b16 %v155
    %v393 = vunpack.c.h.b16 %v155
    %v394 = vunpack.c.l.b16 %v156
    %v395 = vunpack.c.l.b16 %v157
    %v396 = vunpack.c.h.b16 %v157
    %v397 = vunpack.c.l.b16 %v158
    %v398 = vunpack.c.l.b16 %v159
    %v399 = vunpack.c.h.b16 %v159
    %v400 = vunpack.c.l.b16 %v160
    %v401 = vunpack.c.l.b16 %v161
    %v402 = vunpack.c.h.b16 %v161
    %v403 = vunpack.c.l.b16 %v162
    %v404 = vunpack.c.l.b16 %v163
    %v405 = vunpack.c.h.b16 %v163
    %v406 = vunpack.c.l.b16 %v164
    %v407 = vunpack.c.l.b16 %v165
    %v408 = vunpack.c.h.b16 %v165
    %v409 = vunpack.c.l.b16 %v166
    %v410 = vunpack.c.l.b16 %v167
    %v411 = vunpack.c.h.b16 %v167
    %v412 = vunpack.c.l.b16 %v168
    %v413 = vunpack.c.l.b16 %v169
    %v414 = vunpack.c.h.b16 %v169
    %v415 = vunpack.c.l.b16 %v170
    %v416 = vunpack.c.l.b16 %v171
    %v417 = vunpack.c.h.b16 %v171
    %v418 = vunpack.c.l.b16 %v172
    %v419 = vunpack.c.l.b16 %v173
    %v420 = vunpack.c.h.b16 %v173
    %v421 = vunpack.c.l.b16 %v174
    %v422 = vunpack.c.l.b16 %v175
    %v423 = vunpack.c.h.b16 %v175
    %v424 = vunpack.c.l.b16 %v176
    %v425 = vunpack.c.l.b16 %v177
    %v426 = vunpack.c.h.b16 %v177
    %v427 = vunpack.c.l.b16 %v178
    %v428 = vunpack.c.l.b16 %v179
    %v429 = vunpack.c.h.b16 %v179
    %v430 = vunpack.c.l.b16 %v180
    %v431 = vunpack.c.l.b16 %v181
    %v432 = vunpack.c.h.b16 %v181
    %v433 = vunpack.c.l.b16 %v182
    %v434 = vunpack.c.l.b16 %v183
    %v435 = vunpack.c.h.b16 %v183
    %v436 = vunpack.c.l.b16 %v184
    %v437 = vunpack.c.l.b16 %v185
    %v438 = vunpack.c.h.b16 %v185
    %v439 = vunpack.c.l.b16 %v186
    %v440 = vunpack.c.l.b16 %v187
    %v441 = vunpack.c.h.b16 %v187
    %v442 = vunpack.c.l.b16 %v188
    %v443 = vunpack.c.l.b16 %v189
    %v444 = vunpack.c.h.b16 %v189
    %v445 = vunpack.c.l.b16 %v190
    %v446 = vunpack.c.l.b16 %v191
    %v447 = vunpack.c.h.b16 %v191
    %v448 = vunpack.c.l.b16 %v192
    %v449 = vunpack.c.l.b16 %v193
    %v450 = vunpack.c.h.b16 %v193
    %v451 = vunpack.c.l.b16 %v194
    %v452 = vunpack.c.l.b16 %v195
    %v453 = vunpack.c.h.b16 %v195
    %v454 = vunpack.c.l.b16 %v196
    %v455 = vunpack.c.l.b16 %v197
    %v456 = vunpack.c.h.b16 %v197
    %v457 = vunpack.c.l.b16 %v198
    %v458 = vpack.c.b16 %v317, %v314
    %v459 = vpack.c.b16 %v318, %v315
    %v460 = vpack.c.b16 %v319, %v316
    %v461 = vpack.c.b16 %v323, %v320
    %v462 = vpack.c.b16 %v324, %v321
    %v463 = vpack.c.b16 %v325, %v322
    %v464 = vpack.c.b16 %v329, %v326
    %v465 = vpack.c.b16 %v330, %v327
    %v466 = vpack.c.b16 %v331, %v328
    %v467 = vpack.c.b16 %v335, %v332
    %v468 = vpack.c.b16 %v336, %v333
    %v469 = vpack.c.b16 %v337, %v334
    %v470 = vpack.c.b16 %v341, %v338
    %v471 = vpack.c.b16 %v342, %v339
    %v472 = vpack.c.b16 %v343, %v340
    %v473 = vpack.c.b16 %v347, %v344
    %v474 = vpack.c.b16 %v348, %v345
    %v475 = vpack.c.b16 %v349, %v346
    %v476 = vpack.c.b16 %v353, %v350
    %v477 = vpack.c.b16 %v354, %v351
    %v478 = vpack.c.b16 %v355, %v352
    %v479 = vpack.c.b16 %v359, %v356
    %v480 = vpack.c.b16 %v360, %v357
    %v481 = vpack.c.b16 %v361, %v358
    %v482 = vpack.c.b16 %v365, %v362
    %v483 = vpack.c.b16 %v366, %v363
    %v484 = vpack.c.b16 %v367, %v364
    %v485 = vpack.c.b16 %v371, %v368
    %v486 = vpack.c.b16 %v372, %v369
    %v487 = vpack.c.b16 %v373, %v370
    %v488 = vpack.c.b16 %v377, %v374
    %v489 = vpack.c.b16 %v378, %v375
    %v490 = vpack.c.b16 %v379, %v376
    %v491 = vpack.c.b16 %v383, %v380
    %v492 = vpack.c.b16 %v384, %v381
    %v493 = vpack.c.b16 %v385, %v382
    %v494 = vpack.c.b16 %v389, %v386
    %v495 = vpack.c.b16 %v390, %v387
    %v496 = vpack.c.b16 %v391, %v388
    %v497 = vpack.c.b16 %v395, %v392
    %v498 = vpack.c.b16 %v396, %v393
    %v499 = vpack.c.b16 %v397, %v394
    %v500 = vpack.c.b16 %v401, %v398
    %v501 = vpack.c.b16 %v402, %v399
    %v502 = vpack.c.b16 %v403, %v400
    %v503 = vpack.c.b16 %v407, %v404
    %v504 = vpack.c.b16 %v408, %v405
    %v505 = vpack.c.b16 %v409, %v406
    %v506 = vpack.c.b16 %v413, %v410
    %v507 = vpack.c.b16 %v414, %v411
    %v508 = vpack.c.b16 %v415, %v412
    %v509 = vpack.c.b16 %v419, %v416
    %v510 = vpack.c.b16 %v420, %v417
    %v511 = vpack.c.b16 %v421, %v418
    %v512 = vpack.c.b16 %v425, %v422
    %v513 = vpack.c.b16 %v426, %v423
    %v514 = vpack.c.b16 %v427, %v424
    %v515 = vpack.c.b16 %v431, %v428
    %v516 = vpack.c.b16 %v432, %v429
    %v517 = vpack.c.b16 %v433, %v430
    %v518 = vpack.c.b16 %v437, %v434
    %v519 = vpack.c.b16 %v438, %v435
    %v520 = vpack.c.b16 %v439, %v436
    %v521 = vpack.c.b16 %v443, %v440
    %v522 = vpack.c.b16 %v444, %v441
    %v523 = vpack.c.b16 %v445, %v442
    %v524 = vpack.c.b16 %v449, %v446
    %v525 = vpack.c.b16 %v450, %v447
    %v526 = vpack.c.b16 %v451, %v448
    %v527 = vpack.c.b16 %v455, %v452
    %v528 = vpack.c.b16 %v456, %v453
    %v529 = vpack.c.b16 %v457, %v454
    %602 = vmatpush.bf16.msra.mxu0 %v479
    %603 = vmatpush.bf16.msra.mxu0 %v476
    %604 = vmatpush.bf16.msra.mxu0 %v473
    %605 = vmatpush.bf16.msra.mxu0 %v470
    %606 = vmatpush.bf16.msra.mxu0 %v467
    %607 = vmatpush.bf16.msra.mxu0 %v464
    %608 = vmatpush.bf16.msra.mxu0 %v461
    %609 = vmatpush.bf16.msra.mxu0 %v458
    %610 = vmatmul.bf16.gmra.mxu0 %v212
    %v611 = vpop.f32.mrf.mxu0
    %v612 = vadd.f32 %v201, %v611
    %v613 = vpop.f32.mrf.mxu0
    %614 = vdwg.mxu0
    %615 = vmatpush.bf16.msra.mxu0 %v503
    %616 = vmatpush.bf16.msra.mxu0 %v500
    %617 = vmatpush.bf16.msra.mxu0 %v497
    %618 = vmatpush.bf16.msra.mxu0 %v494
    %619 = vmatpush.bf16.msra.mxu0 %v491
    %620 = vmatpush.bf16.msra.mxu0 %v488
    %621 = vmatpush.bf16.msra.mxu0 %v485
    %622 = vmatpush.bf16.msra.mxu0 %v482
    %623 = vmatmul.bf16.gmra.mxu0 %v213
    %v624 = vpop.f32.mrf.mxu0
    %v625 = vadd.f32 %v612, %v624
    %v626 = vpop.f32.mrf.mxu0
    %627 = vdwg.mxu0
    %628 = vmatpush.bf16.msra.mxu0 %v527
    %629 = vmatpush.bf16.msra.mxu0 %v524
    %630 = vmatpush.bf16.msra.mxu0 %v521
    %631 = vmatpush.bf16.msra.mxu0 %v518
    %632 = vmatpush.bf16.msra.mxu0 %v515
    %633 = vmatpush.bf16.msra.mxu0 %v512
    %634 = vmatpush.bf16.msra.mxu0 %v509
    %635 = vmatpush.bf16.msra.mxu0 %v506
    %636 = vmatmul.bf16.gmra.mxu0 %v214
    %v637 = vpop.f32.mrf.mxu0
    %v638 = vadd.f32 %v625, %v637
    %v639 = vpop.f32.mrf.mxu0
    %640 = vdwg.mxu0
    %641 = vmatpush.bf16.msra.mxu0 %v480
    %642 = vmatpush.bf16.msra.mxu0 %v477
    %643 = vmatpush.bf16.msra.mxu0 %v474
    %644 = vmatpush.bf16.msra.mxu0 %v471
    %645 = vmatpush.bf16.msra.mxu0 %v468
    %646 = vmatpush.bf16.msra.mxu0 %v465
    %647 = vmatpush.bf16.msra.mxu0 %v462
    %648 = vmatpush.bf16.msra.mxu0 %v459
    %649 = vmatmul.bf16.gmra.mxu0 %v212
    %v650 = vpop.f32.mrf.mxu0
    %v651 = vadd.f32 %v202, %v650
    %v652 = vpop.f32.mrf.mxu0
    %653 = vdwg.mxu0
    %654 = vmatpush.bf16.msra.mxu0 %v504
    %655 = vmatpush.bf16.msra.mxu0 %v501
    %656 = vmatpush.bf16.msra.mxu0 %v498
    %657 = vmatpush.bf16.msra.mxu0 %v495
    %658 = vmatpush.bf16.msra.mxu0 %v492
    %659 = vmatpush.bf16.msra.mxu0 %v489
    %660 = vmatpush.bf16.msra.mxu0 %v486
    %661 = vmatpush.bf16.msra.mxu0 %v483
    %662 = vmatmul.bf16.gmra.mxu0 %v213
    %v663 = vpop.f32.mrf.mxu0
    %v664 = vadd.f32 %v651, %v663
    %v665 = vpop.f32.mrf.mxu0
    %666 = vdwg.mxu0
    %667 = vmatpush.bf16.msra.mxu0 %v528
    %668 = vmatpush.bf16.msra.mxu0 %v525
    %669 = vmatpush.bf16.msra.mxu0 %v522
    %670 = vmatpush.bf16.msra.mxu0 %v519
    %671 = vmatpush.bf16.msra.mxu0 %v516
    %672 = vmatpush.bf16.msra.mxu0 %v513
    %673 = vmatpush.bf16.msra.mxu0 %v510
    %674 = vmatpush.bf16.msra.mxu0 %v507
    %675 = vmatmul.bf16.gmra.mxu0 %v214
    %v676 = vpop.f32.mrf.mxu0
    %v677 = vadd.f32 %v664, %v676
    %v678 = vpop.f32.mrf.mxu0
    %679 = vdwg.mxu0
    %680 = vmatpush.bf16.msra.mxu0 %v481
    %681 = vmatpush.bf16.msra.mxu0 %v478
    %682 = vmatpush.bf16.msra.mxu0 %v475
    %683 = vmatpush.bf16.msra.mxu0 %v472
    %684 = vmatpush.bf16.msra.mxu0 %v469
    %685 = vmatpush.bf16.msra.mxu0 %v466
    %686 = vmatpush.bf16.msra.mxu0 %v463
    %687 = vmatpush.bf16.msra.mxu0 %v460
    %688 = vmatmul.bf16.gmra.mxu0 %v212
    %v689 = vpop.f32.mrf.mxu0
    %v690 = vadd.f32 %v203, %v689
    %v691 = vpop.f32.mrf.mxu0
    %692 = vdwg.mxu0
    %693 = vmatpush.bf16.msra.mxu0 %v505
    %694 = vmatpush.bf16.msra.mxu0 %v502
    %695 = vmatpush.bf16.msra.mxu0 %v499
    %696 = vmatpush.bf16.msra.mxu0 %v496
    %697 = vmatpush.bf16.msra.mxu0 %v493
    %698 = vmatpush.bf16.msra.mxu0 %v490
    %699 = vmatpush.bf16.msra.mxu0 %v487
    %700 = vmatpush.bf16.msra.mxu0 %v484
    %701 = vmatmul.bf16.gmra.mxu0 %v213
    %v702 = vpop.f32.mrf.mxu0
    %v703 = vadd.f32 %v690, %v702
    %v704 = vpop.f32.mrf.mxu0
    %705 = vdwg.mxu0
    %706 = vmatpush.bf16.msra.mxu0 %v529
    %707 = vmatpush.bf16.msra.mxu0 %v526
    %708 = vmatpush.bf16.msra.mxu0 %v523
    %709 = vmatpush.bf16.msra.mxu0 %v520
    %710 = vmatpush.bf16.msra.mxu0 %v517
    %711 = vmatpush.bf16.msra.mxu0 %v514
    %712 = vmatpush.bf16.msra.mxu0 %v511
    %713 = vmatpush.bf16.msra.mxu0 %v508
    %714 = vmatmul.bf16.gmra.mxu0 %v214
    %v715 = vpop.f32.mrf.mxu0
    %v716 = vadd.f32 %v703, %v715
    %v717 = vpop.f32.mrf.mxu0
    %718 = vdwg.mxu0
    %v719 = vmax.f32 %v638, 0.0
    %v720 = vmax.f32 %v677, 0.0
    %v721 = vmax.f32 %v716, 0.0
    %v722 = vpack.c.bf16 %v719, %v719
    %v723 = vpack.c.bf16 %v720, %v720
    %v724 = vpack.c.bf16 %v721, %v721
    %v725 = vld [vmem:[#allocation8] sm:$0xff]
    %v726 = vld [vmem:[#allocation8 + $0x8] sm:$0xf]
    %v727 = vld [vmem:[#allocation8 + $0xc] sm:$0xff]
    %v728 = vld [vmem:[#allocation8 + $0x14] sm:$0xf]
    %v729 = vld [vmem:[#allocation8 + $0x18] sm:$0xff]
    %v730 = vld [vmem:[#allocation8 + $0x20] sm:$0xf]
    %v731 = vld [vmem:[#allocation8 + $0x24] sm:$0xff]
    %v732 = vld [vmem:[#allocation8 + $0x2c] sm:$0xf]
    %v733 = vld [vmem:[#allocation8 + $0x30] sm:$0xff]
    %v734 = vld [vmem:[#allocation8 + $0x38] sm:$0xf]
    %v735 = vld [vmem:[#allocation8 + $0x3c] sm:$0xff]
    %v736 = vld [vmem:[#allocation8 + $0x44] sm:$0xf]
    %v737 = vld [vmem:[#allocation8 + $0x48] sm:$0xff]
    %v738 = vld [vmem:[#allocation8 + $0x50] sm:$0xf]
    %v739 = vld [vmem:[#allocation8 + $0x54] sm:$0xff]
    %v740 = vld [vmem:[#allocation8 + $0x5c] sm:$0xf]
    %v741 = vld [vmem:[#allocation8 + $0x60] sm:$0xff]
    %v742 = vld [vmem:[#allocation8 + $0x68] sm:$0xf]
    %v743 = vld [vmem:[#allocation8 + $0x6c] sm:$0xff]
    %v744 = vld [vmem:[#allocation8 + $0x74] sm:$0xf]
    %v745 = vld [vmem:[#allocation8 + $0x78] sm:$0xff]
    %v746 = vld [vmem:[#allocation8 + $0x80] sm:$0xf]
    %v747 = vld [vmem:[#allocation8 + $0x84] sm:$0xff]
    %v748 = vld [vmem:[#allocation8 + $0x8c] sm:$0xf]
    %v749 = vld [vmem:[#allocation8 + $0x90] sm:$0xff]
    %v750 = vld [vmem:[#allocation8 + $0x98] sm:$0xf]
    %v751 = vld [vmem:[#allocation8 + $0x9c] sm:$0xff]
    %v752 = vld [vmem:[#allocation8 + $0xa4] sm:$0xf]
    %v753 = vld [vmem:[#allocation8 + $0xa8] sm:$0xff]
    %v754 = vld [vmem:[#allocation8 + $0xb0] sm:$0xf]
    %v755 = vld [vmem:[#allocation8 + $0xb4] sm:$0xff]
    %v756 = vld [vmem:[#allocation8 + $0xbc] sm:$0xf]
    %v757 = vld [vmem:[#allocation8 + $0xc0] sm:$0xff]
    %v758 = vld [vmem:[#allocation8 + $0xc8] sm:$0xf]
    %v759 = vld [vmem:[#allocation8 + $0xcc] sm:$0xff]
    %v760 = vld [vmem:[#allocation8 + $0xd4] sm:$0xf]
    %v761 = vld [vmem:[#allocation8 + $0xd8] sm:$0xff]
    %v762 = vld [vmem:[#allocation8 + $0xe0] sm:$0xf]
    %v763 = vld [vmem:[#allocation8 + $0xe4] sm:$0xff]
    %v764 = vld [vmem:[#allocation8 + $0xec] sm:$0xf]
    %v765 = vld [vmem:[#allocation8 + $0xf0] sm:$0xff]
    %v766 = vld [vmem:[#allocation8 + $0xf8] sm:$0xf]
    %v767 = vld [vmem:[#allocation8 + $0xfc] sm:$0xff]
    %v768 = vld [vmem:[#allocation8 + $0x104] sm:$0xf]
    %v769 = vld [vmem:[#allocation8 + $0x108] sm:$0xff]
    %v770 = vld [vmem:[#allocation8 + $0x110] sm:$0xf]
    %v771 = vld [vmem:[#allocation8 + $0x114] sm:$0xff]
    %v772 = vld [vmem:[#allocation8 + $0x11c] sm:$0xf]
    %v773 = vld [vmem:[#allocation8 + $0x120] sm:$0xff]
    %v774 = vld [vmem:[#allocation8 + $0x128] sm:$0xf]
    %v775 = vld [vmem:[#allocation8 + $0x12c] sm:$0xff]
    %v776 = vld [vmem:[#allocation8 + $0x134] sm:$0xf]
    %v777 = vld [vmem:[#allocation8 + $0x138] sm:$0xff]
    %v778 = vld [vmem:[#allocation8 + $0x140] sm:$0xf]
    %v779 = vld [vmem:[#allocation8 + $0x144] sm:$0xff]
    %v780 = vld [vmem:[#allocation8 + $0x14c] sm:$0xf]
    %v781 = vld [vmem:[#allocation8 + $0x150] sm:$0xff]
    %v782 = vld [vmem:[#allocation8 + $0x158] sm:$0xf]
    %v783 = vld [vmem:[#allocation8 + $0x15c] sm:$0xff]
    %v784 = vld [vmem:[#allocation8 + $0x164] sm:$0xf]
    %v785 = vld [vmem:[#allocation8 + $0x168] sm:$0xff]
    %v786 = vld [vmem:[#allocation8 + $0x170] sm:$0xf]
    %v787 = vld [vmem:[#allocation8 + $0x174] sm:$0xff]
    %v788 = vld [vmem:[#allocation8 + $0x17c] sm:$0xf]
    %v789 = vld [vmem:[#allocation8 + $0x180] sm:$0xff]
    %v790 = vld [vmem:[#allocation8 + $0x188] sm:$0xf]
    %v791 = vld [vmem:[#allocation8 + $0x18c] sm:$0xff]
    %v792 = vld [vmem:[#allocation8 + $0x194] sm:$0xf]
    %v793 = vld [vmem:[#allocation8 + $0x198] sm:$0xff]
    %v794 = vld [vmem:[#allocation8 + $0x1a0] sm:$0xf]
    %v795 = vld [vmem:[#allocation8 + $0x1a4] sm:$0xff]
    %v796 = vld [vmem:[#allocation8 + $0x1ac] sm:$0xf]
    %v797 = vld [vmem:[#allocation8 + $0x1b0] sm:$0xff]
    %v798 = vld [vmem:[#allocation8 + $0x1b8] sm:$0xf]
    %v799 = vld [vmem:[#allocation8 + $0x1bc] sm:$0xff]
    %v800 = vld [vmem:[#allocation8 + $0x1c4] sm:$0xf]
    %v801 = vld [vmem:[#allocation8 + $0x1c8] sm:$0xff]
    %v802 = vld [vmem:[#allocation8 + $0x1d0] sm:$0xf]
    %v803 = vld [vmem:[#allocation8 + $0x1d4] sm:$0xff]
    %v804 = vld [vmem:[#allocation8 + $0x1dc] sm:$0xf]
    %v805 = vld [vmem:[#allocation8 + $0x1e0] sm:$0xff]
    %v806 = vld [vmem:[#allocation8 + $0x1e8] sm:$0xf]
    %v807 = vld [vmem:[#allocation8 + $0x1ec] sm:$0xff]
    %v808 = vld [vmem:[#allocation8 + $0x1f4] sm:$0xf]
    %v809 = vld [vmem:[#allocation8 + $0x1f8] sm:$0xff]
    %v810 = vld [vmem:[#allocation8 + $0x200] sm:$0xf]
    %v811 = vld [vmem:[#allocation8 + $0x204] sm:$0xff]
    %v812 = vld [vmem:[#allocation8 + $0x20c] sm:$0xf]
    %v813 = vld [vmem:[#allocation8 + $0x210] sm:$0xff]
    %v814 = vld [vmem:[#allocation8 + $0x218] sm:$0xf]
    %v815 = vld [vmem:[#allocation8 + $0x21c] sm:$0xff]
    %v816 = vld [vmem:[#allocation8 + $0x224] sm:$0xf]
    %v817 = vld [vmem:[#allocation8 + $0x228] sm:$0xff]
    %v818 = vld [vmem:[#allocation8 + $0x230] sm:$0xf]
    %v819 = vld [vmem:[#allocation8 + $0x234] sm:$0xff]
    %v820 = vld [vmem:[#allocation8 + $0x23c] sm:$0xf]
    %v821 = vld [vmem:[%s4] sm:$0x7]
    %v823 = vperm.slane %v821, 0
    %v824 = vperm.slane %v821, 1
    %v825 = vperm.slane %v821, 2
    %v925 = vunpack.c.l.b16 %v725
    %v926 = vunpack.c.h.b16 %v725
    %v927 = vunpack.c.l.b16 %v726
    %v928 = vunpack.c.l.b16 %v727
    %v929 = vunpack.c.h.b16 %v727
    %v930 = vunpack.c.l.b16 %v728
    %v931 = vunpack.c.l.b16 %v729
    %v932 = vunpack.c.h.b16 %v729
    %v933 = vunpack.c.l.b16 %v730
    %v934 = vunpack.c.l.b16 %v731
    %v935 = vunpack.c.h.b16 %v731
    %v936 = vunpack.c.l.b16 %v732
    %v937 = vunpack.c.l.b16 %v733
    %v938 = vunpack.c.h.b16 %v733
    %v939 = vunpack.c.l.b16 %v734
    %v940 = vunpack.c.l.b16 %v735
    %v941 = vunpack.c.h.b16 %v735
    %v942 = vunpack.c.l.b16 %v736
    %v943 = vunpack.c.l.b16 %v737
    %v944 = vunpack.c.h.b16 %v737
    %v945 = vunpack.c.l.b16 %v738
    %v946 = vunpack.c.l.b16 %v739
    %v947 = vunpack.c.h.b16 %v739
    %v948 = vunpack.c.l.b16 %v740
    %v949 = vunpack.c.l.b16 %v741
    %v950 = vunpack.c.h.b16 %v741
    %v951 = vunpack.c.l.b16 %v742
    %v952 = vunpack.c.l.b16 %v743
    %v953 = vunpack.c.h.b16 %v743
    %v954 = vunpack.c.l.b16 %v744
    %v955 = vunpack.c.l.b16 %v745
    %v956 = vunpack.c.h.b16 %v745
    %v957 = vunpack.c.l.b16 %v746
    %v958 = vunpack.c.l.b16 %v747
    %v959 = vunpack.c.h.b16 %v747
    %v960 = vunpack.c.l.b16 %v748
    %v961 = vunpack.c.l.b16 %v749
    %v962 = vunpack.c.h.b16 %v749
    %v963 = vunpack.c.l.b16 %v750
    %v964 = vunpack.c.l.b16 %v751
    %v965 = vunpack.c.h.b16 %v751
    %v966 = vunpack.c.l.b16 %v752
    %v967 = vunpack.c.l.b16 %v753
    %v968 = vunpack.c.h.b16 %v753
    %v969 = vunpack.c.l.b16 %v754
    %v970 = vunpack.c.l.b16 %v755
    %v971 = vunpack.c.h.b16 %v755
    %v972 = vunpack.c.l.b16 %v756
    %v973 = vunpack.c.l.b16 %v757
    %v974 = vunpack.c.h.b16 %v757
    %v975 = vunpack.c.l.b16 %v758
    %v976 = vunpack.c.l.b16 %v759
    %v977 = vunpack.c.h.b16 %v759
    %v978 = vunpack.c.l.b16 %v760
    %v979 = vunpack.c.l.b16 %v761
    %v980 = vunpack.c.h.b16 %v761
    %v981 = vunpack.c.l.b16 %v762
    %v982 = vunpack.c.l.b16 %v763
    %v983 = vunpack.c.h.b16 %v763
    %v984 = vunpack.c.l.b16 %v764
    %v985 = vunpack.c.l.b16 %v765
    %v986 = vunpack.c.h.b16 %v765
    %v987 = vunpack.c.l.b16 %v766
    %v988 = vunpack.c.l.b16 %v767
    %v989 = vunpack.c.h.b16 %v767
    %v990 = vunpack.c.l.b16 %v768
    %v991 = vunpack.c.l.b16 %v769
    %v992 = vunpack.c.h.b16 %v769
    %v993 = vunpack.c.l.b16 %v770
    %v994 = vunpack.c.l.b16 %v771
    %v995 = vunpack.c.h.b16 %v771
    %v996 = vunpack.c.l.b16 %v772
    %v997 = vunpack.c.l.b16 %v773
    %v998 = vunpack.c.h.b16 %v773
    %v999 = vunpack.c.l.b16 %v774
    %v1000 = vunpack.c.l.b16 %v775
    %v1001 = vunpack.c.h.b16 %v775
    %v1002 = vunpack.c.l.b16 %v776
    %v1003 = vunpack.c.l.b16 %v777
    %v1004 = vunpack.c.h.b16 %v777
    %v1005 = vunpack.c.l.b16 %v778
    %v1006 = vunpack.c.l.b16 %v779
    %v1007 = vunpack.c.h.b16 %v779
    %v1008 = vunpack.c.l.b16 %v780
    %v1009 = vunpack.c.l.b16 %v781
    %v1010 = vunpack.c.h.b16 %v781
    %v1011 = vunpack.c.l.b16 %v782
    %v1012 = vunpack.c.l.b16 %v783
    %v1013 = vunpack.c.h.b16 %v783
    %v1014 = vunpack.c.l.b16 %v784
    %v1015 = vunpack.c.l.b16 %v785
    %v1016 = vunpack.c.h.b16 %v785
    %v1017 = vunpack.c.l.b16 %v786
    %v1018 = vunpack.c.l.b16 %v787
    %v1019 = vunpack.c.h.b16 %v787
    %v1020 = vunpack.c.l.b16 %v788
    %v1021 = vunpack.c.l.b16 %v789
    %v1022 = vunpack.c.h.b16 %v789
    %v1023 = vunpack.c.l.b16 %v790
    %v1024 = vunpack.c.l.b16 %v791
    %v1025 = vunpack.c.h.b16 %v791
    %v1026 = vunpack.c.l.b16 %v792
    %v1027 = vunpack.c.l.b16 %v793
    %v1028 = vunpack.c.h.b16 %v793
    %v1029 = vunpack.c.l.b16 %v794
    %v1030 = vunpack.c.l.b16 %v795
    %v1031 = vunpack.c.h.b16 %v795
    %v1032 = vunpack.c.l.b16 %v796
    %v1033 = vunpack.c.l.b16 %v797
    %v1034 = vunpack.c.h.b16 %v797
    %v1035 = vunpack.c.l.b16 %v798
    %v1036 = vunpack.c.l.b16 %v799
    %v1037 = vunpack.c.h.b16 %v799
    %v1038 = vunpack.c.l.b16 %v800
    %v1039 = vunpack.c.l.b16 %v801
    %v1040 = vunpack.c.h.b16 %v801
    %v1041 = vunpack.c.l.b16 %v802
    %v1042 = vunpack.c.l.b16 %v803
    %v1043 = vunpack.c.h.b16 %v803
    %v1044 = vunpack.c.l.b16 %v804
    %v1045 = vunpack.c.l.b16 %v805
    %v1046 = vunpack.c.h.b16 %v805
    %v1047 = vunpack.c.l.b16 %v806
    %v1048 = vunpack.c.l.b16 %v807
    %v1049 = vunpack.c.h.b16 %v807
    %v1050 = vunpack.c.l.b16 %v808
    %v1051 = vunpack.c.l.b16 %v809
    %v1052 = vunpack.c.h.b16 %v809
    %v1053 = vunpack.c.l.b16 %v810
    %v1054 = vunpack.c.l.b16 %v811
    %v1055 = vunpack.c.h.b16 %v811
    %v1056 = vunpack.c.l.b16 %v812
    %v1057 = vunpack.c.l.b16 %v813
    %v1058 = vunpack.c.h.b16 %v813
    %v1059 = vunpack.c.l.b16 %v814
    %v1060 = vunpack.c.l.b16 %v815
    %v1061 = vunpack.c.h.b16 %v815
    %v1062 = vunpack.c.l.b16 %v816
    %v1063 = vunpack.c.l.b16 %v817
    %v1064 = vunpack.c.h.b16 %v817
    %v1065 = vunpack.c.l.b16 %v818
    %v1066 = vunpack.c.l.b16 %v819
    %v1067 = vunpack.c.h.b16 %v819
    %v1068 = vunpack.c.l.b16 %v820
    %v1069 = vpack.c.b16 %v928, %v925
    %v1070 = vpack.c.b16 %v929, %v926
    %v1071 = vpack.c.b16 %v930, %v927
    %v1072 = vpack.c.b16 %v934, %v931
    %v1073 = vpack.c.b16 %v935, %v932
    %v1074 = vpack.c.b16 %v936, %v933
    %v1075 = vpack.c.b16 %v940, %v937
    %v1076 = vpack.c.b16 %v941, %v938
    %v1077 = vpack.c.b16 %v942, %v939
    %v1078 = vpack.c.b16 %v946, %v943
    %v1079 = vpack.c.b16 %v947, %v944
    %v1080 = vpack.c.b16 %v948, %v945
    %v1081 = vpack.c.b16 %v952, %v949
    %v1082 = vpack.c.b16 %v953, %v950
    %v1083 = vpack.c.b16 %v954, %v951
    %v1084 = vpack.c.b16 %v958, %v955
    %v1085 = vpack.c.b16 %v959, %v956
    %v1086 = vpack.c.b16 %v960, %v957
    %v1087 = vpack.c.b16 %v964, %v961
    %v1088 = vpack.c.b16 %v965, %v962
    %v1089 = vpack.c.b16 %v966, %v963
    %v1090 = vpack.c.b16 %v970, %v967
    %v1091 = vpack.c.b16 %v971, %v968
    %v1092 = vpack.c.b16 %v972, %v969
    %v1093 = vpack.c.b16 %v976, %v973
    %v1094 = vpack.c.b16 %v977, %v974
    %v1095 = vpack.c.b16 %v978, %v975
    %v1096 = vpack.c.b16 %v982, %v979
    %v1097 = vpack.c.b16 %v983, %v980
    %v1098 = vpack.c.b16 %v984, %v981
    %v1099 = vpack.c.b16 %v988, %v985
    %v1100 = vpack.c.b16 %v989, %v986
    %v1101 = vpack.c.b16 %v990, %v987
    %v1102 = vpack.c.b16 %v994, %v991
    %v1103 = vpack.c.b16 %v995, %v992
    %v1104 = vpack.c.b16 %v996, %v993
    %v1105 = vpack.c.b16 %v1000, %v997
    %v1106 = vpack.c.b16 %v1001, %v998
    %v1107 = vpack.c.b16 %v1002, %v999
    %v1108 = vpack.c.b16 %v1006, %v1003
    %v1109 = vpack.c.b16 %v1007, %v1004
    %v1110 = vpack.c.b16 %v1008, %v1005
    %v1111 = vpack.c.b16 %v1012, %v1009
    %v1112 = vpack.c.b16 %v1013, %v1010
    %v1113 = vpack.c.b16 %v1014, %v1011
    %v1114 = vpack.c.b16 %v1018, %v1015
    %v1115 = vpack.c.b16 %v1019, %v1016
    %v1116 = vpack.c.b16 %v1020, %v1017
    %v1117 = vpack.c.b16 %v1024, %v1021
    %v1118 = vpack.c.b16 %v1025, %v1022
    %v1119 = vpack.c.b16 %v1026, %v1023
    %v1120 = vpack.c.b16 %v1030, %v1027
    %v1121 = vpack.c.b16 %v1031, %v1028
    %v1122 = vpack.c.b16 %v1032, %v1029
    %v1123 = vpack.c.b16 %v1036, %v1033
    %v1124 = vpack.c.b16 %v1037, %v1034
    %v1125 = vpack.c.b16 %v1038, %v1035
    %v1126 = vpack.c.b16 %v1042, %v1039
    %v1127 = vpack.c.b16 %v1043, %v1040
    %v1128 = vpack.c.b16 %v1044, %v1041
    %v1129 = vpack.c.b16 %v1048, %v1045
    %v1130 = vpack.c.b16 %v1049, %v1046
    %v1131 = vpack.c.b16 %v1050, %v1047
    %v1132 = vpack.c.b16 %v1054, %v1051
    %v1133 = vpack.c.b16 %v1055, %v1052
    %v1134 = vpack.c.b16 %v1056, %v1053
    %v1135 = vpack.c.b16 %v1060, %v1057
    %v1136 = vpack.c.b16 %v1061, %v1058
    %v1137 = vpack.c.b16 %v1062, %v1059
    %v1138 = vpack.c.b16 %v1066, %v1063
    %v1139 = vpack.c.b16 %v1067, %v1064
    %v1140 = vpack.c.b16 %v1068, %v1065
    %1213 = vmatpush.bf16.msra.mxu0 %v1090
    %1214 = vmatpush.bf16.msra.mxu0 %v1087
    %1215 = vmatpush.bf16.msra.mxu0 %v1084
    %1216 = vmatpush.bf16.msra.mxu0 %v1081
    %1217 = vmatpush.bf16.msra.mxu0 %v1078
    %1218 = vmatpush.bf16.msra.mxu0 %v1075
    %1219 = vmatpush.bf16.msra.mxu0 %v1072
    %1220 = vmatpush.bf16.msra.mxu0 %v1069
    %1221 = vmatmul.bf16.gmra.mxu0 %v722
    %v1222 = vpop.f32.mrf.mxu0
    %v1223 = vadd.f32 %v823, %v1222
    %v1224 = vpop.f32.mrf.mxu0
    %1225 = vdwg.mxu0
    %1226 = vmatpush.bf16.msra.mxu0 %v1114
    %1227 = vmatpush.bf16.msra.mxu0 %v1111
    %1228 = vmatpush.bf16.msra.mxu0 %v1108
    %1229 = vmatpush.bf16.msra.mxu0 %v1105
    %1230 = vmatpush.bf16.msra.mxu0 %v1102
    %1231 = vmatpush.bf16.msra.mxu0 %v1099
    %1232 = vmatpush.bf16.msra.mxu0 %v1096
    %1233 = vmatpush.bf16.msra.mxu0 %v1093
    %1234 = vmatmul.bf16.gmra.mxu0 %v723
    %v1235 = vpop.f32.mrf.mxu0
    %v1236 = vadd.f32 %v1223, %v1235
    %v1237 = vpop.f32.mrf.mxu0
    %1238 = vdwg.mxu0
    %1239 = vmatpush.bf16.msra.mxu0 %v1138
    %1240 = vmatpush.bf16.msra.mxu0 %v1135
    %1241 = vmatpush.bf16.msra.mxu0 %v1132
    %1242 = vmatpush.bf16.msra.mxu0 %v1129
    %1243 = vmatpush.bf16.msra.mxu0 %v1126
    %1244 = vmatpush.bf16.msra.mxu0 %v1123
    %1245 = vmatpush.bf16.msra.mxu0 %v1120
    %1246 = vmatpush.bf16.msra.mxu0 %v1117
    %1247 = vmatmul.bf16.gmra.mxu0 %v724
    %v1248 = vpop.f32.mrf.mxu0
    %v1249 = vadd.f32 %v1236, %v1248
    %v1250 = vpop.f32.mrf.mxu0
    %1251 = vdwg.mxu0
    %1252 = vmatpush.bf16.msra.mxu0 %v1091
    %1253 = vmatpush.bf16.msra.mxu0 %v1088
    %1254 = vmatpush.bf16.msra.mxu0 %v1085
    %1255 = vmatpush.bf16.msra.mxu0 %v1082
    %1256 = vmatpush.bf16.msra.mxu0 %v1079
    %1257 = vmatpush.bf16.msra.mxu0 %v1076
    %1258 = vmatpush.bf16.msra.mxu0 %v1073
    %1259 = vmatpush.bf16.msra.mxu0 %v1070
    %1260 = vmatmul.bf16.gmra.mxu0 %v722
    %v1261 = vpop.f32.mrf.mxu0
    %v1262 = vadd.f32 %v824, %v1261
    %v1263 = vpop.f32.mrf.mxu0
    %1264 = vdwg.mxu0
    %1265 = vmatpush.bf16.msra.mxu0 %v1115
    %1266 = vmatpush.bf16.msra.mxu0 %v1112
    %1267 = vmatpush.bf16.msra.mxu0 %v1109
    %1268 = vmatpush.bf16.msra.mxu0 %v1106
    %1269 = vmatpush.bf16.msra.mxu0 %v1103
    %1270 = vmatpush.bf16.msra.mxu0 %v1100
    %1271 = vmatpush.bf16.msra.mxu0 %v1097
    %1272 = vmatpush.bf16.msra.mxu0 %v1094
    %1273 = vmatmul.bf16.gmra.mxu0 %v723
    %v1274 = vpop.f32.mrf.mxu0
    %v1275 = vadd.f32 %v1262, %v1274
    %v1276 = vpop.f32.mrf.mxu0
    %1277 = vdwg.mxu0
    %1278 = vmatpush.bf16.msra.mxu0 %v1139
    %1279 = vmatpush.bf16.msra.mxu0 %v1136
    %1280 = vmatpush.bf16.msra.mxu0 %v1133
    %1281 = vmatpush.bf16.msra.mxu0 %v1130
    %1282 = vmatpush.bf16.msra.mxu0 %v1127
    %1283 = vmatpush.bf16.msra.mxu0 %v1124
    %1284 = vmatpush.bf16.msra.mxu0 %v1121
    %1285 = vmatpush.bf16.msra.mxu0 %v1118
    %1286 = vmatmul.bf16.gmra.mxu0 %v724
    %v1287 = vpop.f32.mrf.mxu0
    %v1288 = vadd.f32 %v1275, %v1287
    %v1289 = vpop.f32.mrf.mxu0
    %1290 = vdwg.mxu0
    %1291 = vmatpush.bf16.msra.mxu0 %v1092
    %1292 = vmatpush.bf16.msra.mxu0 %v1089
    %1293 = vmatpush.bf16.msra.mxu0 %v1086
    %1294 = vmatpush.bf16.msra.mxu0 %v1083
    %1295 = vmatpush.bf16.msra.mxu0 %v1080
    %1296 = vmatpush.bf16.msra.mxu0 %v1077
    %1297 = vmatpush.bf16.msra.mxu0 %v1074
    %1298 = vmatpush.bf16.msra.mxu0 %v1071
    %1299 = vmatmul.bf16.gmra.mxu0 %v722
    %v1300 = vpop.f32.mrf.mxu0
    %v1301 = vadd.f32 %v825, %v1300
    %v1302 = vpop.f32.mrf.mxu0
    %1303 = vdwg.mxu0
    %1304 = vmatpush.bf16.msra.mxu0 %v1116
    %1305 = vmatpush.bf16.msra.mxu0 %v1113
    %1306 = vmatpush.bf16.msra.mxu0 %v1110
    %1307 = vmatpush.bf16.msra.mxu0 %v1107
    %1308 = vmatpush.bf16.msra.mxu0 %v1104
    %1309 = vmatpush.bf16.msra.mxu0 %v1101
    %1310 = vmatpush.bf16.msra.mxu0 %v1098
    %1311 = vmatpush.bf16.msra.mxu0 %v1095
    %1312 = vmatmul.bf16.gmra.mxu0 %v723
    %v1313 = vpop.f32.mrf.mxu0
    %v1314 = vadd.f32 %v1301, %v1313
    %v1315 = vpop.f32.mrf.mxu0
    %1316 = vdwg.mxu0
    %1317 = vmatpush.bf16.msra.mxu0 %v1140
    %1318 = vmatpush.bf16.msra.mxu0 %v1137
    %1319 = vmatpush.bf16.msra.mxu0 %v1134
    %1320 = vmatpush.bf16.msra.mxu0 %v1131
    %1321 = vmatpush.bf16.msra.mxu0 %v1128
    %1322 = vmatpush.bf16.msra.mxu0 %v1125
    %1323 = vmatpush.bf16.msra.mxu0 %v1122
    %1324 = vmatpush.bf16.msra.mxu0 %v1119
    %1325 = vmatmul.bf16.gmra.mxu0 %v724
    %v1326 = vpop.f32.mrf.mxu0
    %v1327 = vadd.f32 %v1314, %v1326
    %v1328 = vpop.f32.mrf.mxu0
    %1329 = vdwg.mxu0
    %v1330 = vmax.f32 %v1249, 0.0
    %v1331 = vmax.f32 %v1288, 0.0
    %v1332 = vmax.f32 %v1327, 0.0
    %v1333 = vpack.c.bf16 %v1330, %v1330
    %v1334 = vpack.c.bf16 %v1331, %v1331
    %v1335 = vpack.c.bf16 %v1332, %v1332
    %v1336 = vld [vmem:[#allocation10] sm:$0xf]
    %v1337 = vld [vmem:[#allocation10 + $0x4] sm:$0xf]
    %v1338 = vld [vmem:[#allocation10 + $0x8] sm:$0xf]
    %v1339 = vld [vmem:[#allocation10 + $0xc] sm:$0xf]
    %v1340 = vld [vmem:[#allocation10 + $0x10] sm:$0xf]
    %v1341 = vld [vmem:[#allocation10 + $0x14] sm:$0xf]
    %v1342 = vld [vmem:[#allocation10 + $0x18] sm:$0xf]
    %v1343 = vld [vmem:[#allocation10 + $0x1c] sm:$0xf]
    %v1344 = vld [vmem:[#allocation10 + $0x20] sm:$0xf]
    %v1345 = vld [vmem:[#allocation10 + $0x24] sm:$0xf]
    %v1346 = vld [vmem:[#allocation10 + $0x28] sm:$0xf]
    %v1347 = vld [vmem:[#allocation10 + $0x2c] sm:$0xf]
    %v1348 = vld [vmem:[#allocation10 + $0x30] sm:$0xf]
    %v1349 = vld [vmem:[#allocation10 + $0x34] sm:$0xf]
    %v1350 = vld [vmem:[#allocation10 + $0x38] sm:$0xf]
    %v1351 = vld [vmem:[#allocation10 + $0x3c] sm:$0xf]
    %v1352 = vld [vmem:[#allocation10 + $0x40] sm:$0xf]
    %v1353 = vld [vmem:[#allocation10 + $0x44] sm:$0xf]
    %v1354 = vld [vmem:[#allocation10 + $0x48] sm:$0xf]
    %v1355 = vld [vmem:[#allocation10 + $0x4c] sm:$0xf]
    %v1356 = vld [vmem:[#allocation10 + $0x50] sm:$0xf]
    %v1357 = vld [vmem:[#allocation10 + $0x54] sm:$0xf]
    %v1358 = vld [vmem:[#allocation10 + $0x58] sm:$0xf]
    %v1359 = vld [vmem:[#allocation10 + $0x5c] sm:$0xf]
    %v1360 = vld [vmem:[#allocation10 + $0x60] sm:$0xf]
    %v1361 = vld [vmem:[#allocation10 + $0x64] sm:$0xf]
    %v1362 = vld [vmem:[#allocation10 + $0x68] sm:$0xf]
    %v1363 = vld [vmem:[#allocation10 + $0x6c] sm:$0xf]
    %v1364 = vld [vmem:[#allocation10 + $0x70] sm:$0xf]
    %v1365 = vld [vmem:[#allocation10 + $0x74] sm:$0xf]
    %v1366 = vld [vmem:[#allocation10 + $0x78] sm:$0xf]
    %v1367 = vld [vmem:[#allocation10 + $0x7c] sm:$0xf]
    %v1368 = vld [vmem:[#allocation10 + $0x80] sm:$0xf]
    %v1369 = vld [vmem:[#allocation10 + $0x84] sm:$0xf]
    %v1370 = vld [vmem:[#allocation10 + $0x88] sm:$0xf]
    %v1371 = vld [vmem:[#allocation10 + $0x8c] sm:$0xf]
    %v1372 = vld [vmem:[#allocation10 + $0x90] sm:$0xf]
    %v1373 = vld [vmem:[#allocation10 + $0x94] sm:$0xf]
    %v1374 = vld [vmem:[#allocation10 + $0x98] sm:$0xf]
    %v1375 = vld [vmem:[#allocation10 + $0x9c] sm:$0xf]
    %v1376 = vld [vmem:[#allocation10 + $0xa0] sm:$0xf]
    %v1377 = vld [vmem:[#allocation10 + $0xa4] sm:$0xf]
    %v1378 = vld [vmem:[#allocation10 + $0xa8] sm:$0xf]
    %v1379 = vld [vmem:[#allocation10 + $0xac] sm:$0xf]
    %v1380 = vld [vmem:[#allocation10 + $0xb0] sm:$0xf]
    %v1381 = vld [vmem:[#allocation10 + $0xb4] sm:$0xf]
    %v1382 = vld [vmem:[#allocation10 + $0xb8] sm:$0xf]
    %v1383 = vld [vmem:[#allocation10 + $0xbc] sm:$0xf]
    %v1384 = vld [vmem:[%s6] sm:$0x1]
    %v1386 = vperm.slane %v1384, 0
    %v1436 = vunpack.c.l.b16 %v1336
    %v1437 = vunpack.c.l.b16 %v1337
    %v1438 = vunpack.c.l.b16 %v1338
    %v1439 = vunpack.c.l.b16 %v1339
    %v1440 = vunpack.c.l.b16 %v1340
    %v1441 = vunpack.c.l.b16 %v1341
    %v1442 = vunpack.c.l.b16 %v1342
    %v1443 = vunpack.c.l.b16 %v1343
    %v1444 = vunpack.c.l.b16 %v1344
    %v1445 = vunpack.c.l.b16 %v1345
    %v1446 = vunpack.c.l.b16 %v1346
    %v1447 = vunpack.c.l.b16 %v1347
    %v1448 = vunpack.c.l.b16 %v1348
    %v1449 = vunpack.c.l.b16 %v1349
    %v1450 = vunpack.c.l.b16 %v1350
    %v1451 = vunpack.c.l.b16 %v1351
    %v1452 = vunpack.c.l.b16 %v1352
    %v1453 = vunpack.c.l.b16 %v1353
    %v1454 = vunpack.c.l.b16 %v1354
    %v1455 = vunpack.c.l.b16 %v1355
    %v1456 = vunpack.c.l.b16 %v1356
    %v1457 = vunpack.c.l.b16 %v1357
    %v1458 = vunpack.c.l.b16 %v1358
    %v1459 = vunpack.c.l.b16 %v1359
    %v1460 = vunpack.c.l.b16 %v1360
    %v1461 = vunpack.c.l.b16 %v1361
    %v1462 = vunpack.c.l.b16 %v1362
    %v1463 = vunpack.c.l.b16 %v1363
    %v1464 = vunpack.c.l.b16 %v1364
    %v1465 = vunpack.c.l.b16 %v1365
    %v1466 = vunpack.c.l.b16 %v1366
    %v1467 = vunpack.c.l.b16 %v1367
    %v1468 = vunpack.c.l.b16 %v1368
    %v1469 = vunpack.c.l.b16 %v1369
    %v1470 = vunpack.c.l.b16 %v1370
    %v1471 = vunpack.c.l.b16 %v1371
    %v1472 = vunpack.c.l.b16 %v1372
    %v1473 = vunpack.c.l.b16 %v1373
    %v1474 = vunpack.c.l.b16 %v1374
    %v1475 = vunpack.c.l.b16 %v1375
    %v1476 = vunpack.c.l.b16 %v1376
    %v1477 = vunpack.c.l.b16 %v1377
    %v1478 = vunpack.c.l.b16 %v1378
    %v1479 = vunpack.c.l.b16 %v1379
    %v1480 = vunpack.c.l.b16 %v1380
    %v1481 = vunpack.c.l.b16 %v1381
    %v1482 = vunpack.c.l.b16 %v1382
    %v1483 = vunpack.c.l.b16 %v1383
    %v1484 = vpack.c.b16 %v1437, %v1436
    %v1485 = vpack.c.b16 %v1439, %v1438
    %v1486 = vpack.c.b16 %v1441, %v1440
    %v1487 = vpack.c.b16 %v1443, %v1442
    %v1488 = vpack.c.b16 %v1445, %v1444
    %v1489 = vpack.c.b16 %v1447, %v1446
    %v1490 = vpack.c.b16 %v1449, %v1448
    %v1491 = vpack.c.b16 %v1451, %v1450
    %v1492 = vpack.c.b16 %v1453, %v1452
    %v1493 = vpack.c.b16 %v1455, %v1454
    %v1494 = vpack.c.b16 %v1457, %v1456
    %v1495 = vpack.c.b16 %v1459, %v1458
    %v1496 = vpack.c.b16 %v1461, %v1460
    %v1497 = vpack.c.b16 %v1463, %v1462
    %v1498 = vpack.c.b16 %v1465, %v1464
    %v1499 = vpack.c.b16 %v1467, %v1466
    %v1500 = vpack.c.b16 %v1469, %v1468
    %v1501 = vpack.c.b16 %v1471, %v1470
    %v1502 = vpack.c.b16 %v1473, %v1472
    %v1503 = vpack.c.b16 %v1475, %v1474
    %v1504 = vpack.c.b16 %v1477, %v1476
    %v1505 = vpack.c.b16 %v1479, %v1478
    %v1506 = vpack.c.b16 %v1481, %v1480
    %v1507 = vpack.c.b16 %v1483, %v1482
    %1532 = vmatpush.bf16.msra.mxu0 %v1491
    %1533 = vmatpush.bf16.msra.mxu0 %v1490
    %1534 = vmatpush.bf16.msra.mxu0 %v1489
    %1535 = vmatpush.bf16.msra.mxu0 %v1488
    %1536 = vmatpush.bf16.msra.mxu0 %v1487
    %1537 = vmatpush.bf16.msra.mxu0 %v1486
    %1538 = vmatpush.bf16.msra.mxu0 %v1485
    %1539 = vmatpush.bf16.msra.mxu0 %v1484
    %1540 = vmatmul.bf16.gmra.mxu0 %v1333
    %v1541 = vpop.f32.mrf.mxu0
    %v1542 = vadd.f32 %v1386, %v1541
    %v1543 = vpop.f32.mrf.mxu0
    %1544 = vdwg.mxu0
    %1545 = vmatpush.bf16.msra.mxu0 %v1499
    %1546 = vmatpush.bf16.msra.mxu0 %v1498
    %1547 = vmatpush.bf16.msra.mxu0 %v1497
    %1548 = vmatpush.bf16.msra.mxu0 %v1496
    %1549 = vmatpush.bf16.msra.mxu0 %v1495
    %1550 = vmatpush.bf16.msra.mxu0 %v1494
    %1551 = vmatpush.bf16.msra.mxu0 %v1493
    %1552 = vmatpush.bf16.msra.mxu0 %v1492
    %1553 = vmatmul.bf16.gmra.mxu0 %v1334
    %v1554 = vpop.f32.mrf.mxu0
    %v1555 = vadd.f32 %v1542, %v1554
    %v1556 = vpop.f32.mrf.mxu0
    %1557 = vdwg.mxu0
    %1558 = vmatpush.bf16.msra.mxu0 %v1507
    %1559 = vmatpush.bf16.msra.mxu0 %v1506
    %1560 = vmatpush.bf16.msra.mxu0 %v1505
    %1561 = vmatpush.bf16.msra.mxu0 %v1504
    %1562 = vmatpush.bf16.msra.mxu0 %v1503
    %1563 = vmatpush.bf16.msra.mxu0 %v1502
    %1564 = vmatpush.bf16.msra.mxu0 %v1501
    %1565 = vmatpush.bf16.msra.mxu0 %v1500
    %1566 = vmatmul.bf16.gmra.mxu0 %v1335
    %v1567 = vpop.f32.mrf.mxu0
    %v1568 = vadd.f32 %v1555, %v1567
    %v1569 = vpop.f32.mrf.mxu0
    %1570 = vdwg.mxu0
    %v1571 = vxor.u32 %v1568, 2147483648
    %v1572 = vmul.f32 %v1571, 1.442695
    %v1573 = vpow.pop %v1572
    %v1574 = vadd.f32 %v1573, 1.0
    %v1575 = vrcp.pop %v1574
    %v1576 = vmul.f32 %v1574, %v1575
    %v1577 = vsub.f32 1.0, %v1576
    %v1578 = vmul.f32 %v1575, %v1577
    %v1579 = vadd.f32 %v1575, %v1578
    %vm1580 = vweird.f32 %v1574
    %vm1581 = vweird.f32 %v1575
    %vm1582 = vmor %vm1580, %vm1581
    %v1583 = vsel %vm1582, %v1575, %v1579
    %v1584 = vand.u32 2147483647, %v1574
    %vm1585 = vcmp.eq.f32.partialorder %v1584, 8.507059e+37
    %v1586 = vand.u32 %v1574, 2147483648
    %v1587 = vor.u32 1.1754944e-38, %v1586
    %v1588 = vsel %vm1585, %v1587, %v1583
    %v1589 = vmul.f32 1.0, %v1588
    %1590 = vst [vmem:[#allocation11] sm:$0xff] %v1589
    // Predicated region
    $region50: #{tpu_custom_call.1} parent=1 // pred_check
      _
    $region51: #{tpu_custom_call.1} parent=1 // pred_check_branch
      %1592 = sbr.rel (0) target = $region53
    $region52: #{tpu_custom_call.1} parent=1 // pred_region
      %1594 = vsyncadd [#allocation4], 0
      %s1596 = sshll.u32 [#allocation11], 4
      %s1597 = int_to_ptr.vmem [resolvable:$true] %s1596
      %s1598 = sshll.u32 %s7, 4
      %s1599 = int_to_ptr.hbm [resolvable:$true] %s1598
      %1601 = dma.vmem_to_hbm [thread:$0]  %s1597, 128, %s1599, [#allocation4]
    $region53: #{tpu_custom_call.1} parent=1 // pred_fallthru
      _
    // Predicated region
    $region54: #{tpu_custom_call.1} parent=1 // pred_check
      _
    $region55: #{tpu_custom_call.1} parent=1 // pred_check_branch
      %1603 = sbr.rel (0) target = $region57
    $region56: #{tpu_custom_call.1} parent=1 // pred_region
      %1605 = dma.done [#allocation4], 128
    $region57: #{tpu_custom_call.1} parent=1 // pred_fallthru
      _
    %1606 = vsyncpa [#allocation3], 1
    %1607 = vsyncpa [#allocation6], 1
    %1608 = vsyncpa [#allocation9], 1
    %1609 = vsyncpa [#allocation4], 1

</llo_original>
